<compile_context>
chip_gen: v6e
topology: v6e:2x2x1
jax: 0.10.0
libtpu: 0.0.40
codegen_flags: <defaults>
</compile_context>

<pallas_src>
import jax
import jax.numpy as jnp
from jax.experimental import pallas as pl
from jax.experimental.pallas import tpu as pltpu


# --------------------------- weight repacking (host, done ONCE) --------------------------- #
def _conv7x7_to_dense(w, H, W):
    """Repack a (1, 2, 7, 7) OIHW conv kernel (stride 1, pad 3) into a dense (2, H*W, H*W)
    matrix M with  out_flat = avg_flat @ M[0] + max_flat @ M[1]  (zero padding folded in)."""
    wc = jnp.asarray(w)[0].astype(jnp.float32)              # (2, 7, 7)
    pi = jnp.arange(H).reshape(H, 1, 1, 1)                  # source row
    pj = jnp.arange(W).reshape(1, W, 1, 1)                  # source col
    oi = jnp.arange(H).reshape(1, 1, H, 1)                  # output row
    oj = jnp.arange(W).reshape(1, 1, 1, W)                  # output col
    kh = pi - oi + 3                                        # tap row index
    kw = pj - oj + 3                                        # tap col index
    valid = (kh >= 0) & (kh < 7) & (kw >= 0) & (kw < 7)     # (H, W, H, W)
    vals = wc[:, jnp.clip(kh, 0, 6), jnp.clip(kw, 0, 6)]    # (2, H, W, H, W)
    mat = jnp.where(valid[None], vals, 0.0)
    return mat.reshape(2, H * W, H * W)                     # [c, pi*W+pj, oi*W+oj]


def _pick_weight_col_tile(HW, itemsize, budget_bytes):
    """Largest output-column tile tn of the (2, HW, tn) weight block fitting the VMEM budget."""
    if 2 * HW * HW * itemsize <= budget_bytes:              # single-buffered full block fits
        return HW
    tn = (HW // 128) * 128
    while tn >= 128:
        # streamed column tiles get double-buffered by the pipeline
        if HW % tn == 0 and 2 * 2 * HW * tn * itemsize <= budget_bytes:
            return tn
        tn -= 128
    # TODO(synk): HW with no 128-multiple divisor -> masked tiles or the banded-conv path.
    return HW


# ----------------------------------- kernel ----------------------------------- #
def _spatial_attention_kernel(x_ref, w_ref, b_ref, o_ref):
    # x_ref : (Bt, C, HW)   VMEM f32   (HW lane-dense; ideally HW % 128 == 0)
    # w_ref : (2, HW, TN)   VMEM bf16  (dense conv matrix: [avg half, max half])
    # b_ref : (1,)          SMEM f32   (conv bias scalar)
    # o_ref : (Bt, TN)      VMEM       (lane/sublane-dense attention slab)
    x = x_ref[...]
    avg = jnp.mean(x, axis=1)                               # channel mean -> (Bt, HW), f32
    mx = jnp.max(x, axis=1)                                 # channel max  -> (Bt, HW), f32
    cd = w_ref.dtype
    # Whole 7x7 conv = two accumulating MXU GEMMs (no lane concat), f32 accumulation.
    conv = jnp.dot(avg.astype(cd), w_ref[0], preferred_element_type=jnp.float32)
    conv = conv + jnp.dot(mx.astype(cd), w_ref[1], preferred_element_type=jnp.float32)
    att = jax.nn.sigmoid(conv + b_ref[0])                   # bias + sigmoid in f32 (EUP)
    o_ref[...] = att.astype(o_ref.dtype)


# ---------------------------------- wrapper ------------------------------------ #
def make_spatial_attention(w, b, H, W, *, compute_dtype=jnp.bfloat16,
                           batch_tile=8, weight_block_budget_bytes=8 << 20):
    """Build the forward fn once: repacks the (1,2,7,7) conv weights into a dense matrix
    (outside jit), picks tiling, and returns a jitted  x:(B,C,H,W) -> (B,1,H,W)  callable."""
    HW = H * W
    wmat = _conv7x7_to_dense(w, H, W).astype(compute_dtype)          # (2, HW, HW), built ONCE
    bias = jnp.asarray(b, jnp.float32).reshape(1)
    itemsize = jnp.dtype(compute_dtype).itemsize
    tn = _pick_weight_col_tile(HW, itemsize, weight_block_budget_bytes)
    n_tiles = HW // tn

    if n_tiles == 1:
        # Constant block across the whole grid -> single-buffer it (no wasted VMEM).
        w_spec = pl.BlockSpec((2, HW, tn), lambda i, n: (0, 0, n),
                              pipeline_mode=pl.Buffered(1))
    else:
        # Streamed column tiles: keep default double-buffering so the DMA stays hidden.
        w_spec = pl.BlockSpec((2, HW, tn), lambda i, n: (0, 0, n))

    def forward(x):
        B, C, h, w_ = x.shape
        assert (h, w_) == (H, W), "feature-map size must match the factory"
        bt = min(B, batch_tile)                              # batch tile on the GEMM M axis
        grid = (pl.cdiv(B, bt), n_tiles)
        xr = x.reshape(B, C, HW)                             # lane-dense view (free, row-major)

        out = pl.pallas_call(
            _spatial_attention_kernel,
            out_shape=jax.ShapeDtypeStruct((B, HW), x.dtype),
            grid=grid,
            in_specs=[
                pl.BlockSpec((bt, C, HW), lambda i, n: (i, 0, 0)),
                w_spec,
                pl.BlockSpec(memory_space=pltpu.MemorySpace.SMEM),
            ],
            out_specs=pl.BlockSpec((bt, tn), lambda i, n: (i, n)),
            compiler_params=pltpu.CompilerParams(
                dimension_semantics=("parallel", "parallel")),
        )(xr, wmat, bias)
        return out.reshape(B, 1, H, W)

    return jax.jit(forward)


# ----------------------------- pure-JAX reference ------------------------------ #
def _ref_spatial_attention(x, w, b):
    avg = x.mean(axis=1, keepdims=True)
    mx = x.max(axis=1, keepdims=True)
    inp = jnp.concatenate([avg, mx], axis=1)
    out = jax.lax.conv_general_dilated(
        inp, w, (1, 1), ((3, 3), (3, 3)),
        dimension_numbers=("NCHW", "OIHW", "NCHW"),
        precision=jax.lax.Precision.HIGHEST)
    return jax.nn.sigmoid(out + b[None, :, None, None])


if __name__ == "__main__":
    B, C, H, W = 2, 4, 16, 16

    key = jax.random.PRNGKey(0)
    kx, kw, kb = jax.random.split(key, 3)
    x = jax.random.normal(kx, (B, C, H, W), jnp.float32)
    w = jax.random.normal(kw, (1, 2, 7, 7), jnp.float32) * 0.1
    b = jax.random.normal(kb, (1,), jnp.float32) * 0.1

    fwd = make_spatial_attention(w, b, H, W)                 # repack + jit once
    out = fwd(x)
    jax.block_until_ready(out)

    ref = _ref_spatial_attention(x, w, b)
    assert out.shape == (B, 1, H, W)
    err = jnp.max(jnp.abs(out - ref))
    # bf16 GEMM operands with f32 accumulation: loose-but-meaningful tolerance for a sigmoid map.
    assert jnp.allclose(out, ref, atol=2e-2, rtol=2e-2), f"mismatch vs reference, max abs err {err}"

    print("KERNEL_OK")
</pallas_src>

<mosaic_0001>
module attributes {stable_mosaic.version = 11 : i64} {
  func.func @_spatial_attention_kernel(%arg0: i32, %arg1: i32, %arg2: memref<2x4x256xf32, #tpu.memory_space<vmem>>, %arg3: memref<2x256x256xbf16, #tpu.memory_space<vmem>>, %arg4: memref<1xf32, #tpu.memory_space<smem>>, %arg5: memref<2x256xf32, #tpu.memory_space<vmem>>) attributes {dimension_semantics = [#tpu.dimension_semantics<parallel>, #tpu.dimension_semantics<parallel>], iteration_bounds = array<i64: 1, 1>, scalar_prefetch = 0 : i64, scratch_operands = 0 : i64, tpu.core_type = #tpu.core_type<tc>, window_params = [{transform_indices = @transform_0, window_bounds = array<i64: 2, 4, 256>}, {pipeline_mode = #tpu.pipeline_mode<synchronous>, transform_indices = @transform_1, window_bounds = array<i64: 2, 256, 256>}, {transform_indices = @transform_2, window_bounds = array<i64: 1>}, {transform_indices = @transform_3, window_bounds = array<i64: 2, 256>}]} {
    %c0 = arith.constant 0 : index
    %c0_0 = arith.constant 0 : index
    %c0_1 = arith.constant 0 : index
    %0 = vector.load %arg2[%c0, %c0_0, %c0_1] : memref<2x4x256xf32, #tpu.memory_space<vmem>>, vector<2x4x256xf32>
    %cst = arith.constant dense<0.000000e+00> : vector<2x256xf32>
    %1 = vector.multi_reduction <add>, %0, %cst [1] : vector<2x4x256xf32> to vector<2x256xf32>
    %cst_2 = arith.constant 4.000000e+00 : f32
    %2 = vector.broadcast %cst_2 : f32 to vector<2x256xf32>
    %3 = arith.divf %1, %2 : vector<2x256xf32>
    %cst_3 = arith.constant dense<0xFF800000> : vector<2x256xf32>
    %4 = vector.multi_reduction <maximumf>, %0, %cst_3 [1] : vector<2x4x256xf32> to vector<2x256xf32>
    %5 = arith.truncf %3 : vector<2x256xf32> to vector<2x256xbf16>
    %c0_4 = arith.constant 0 : index
    %c0_5 = arith.constant 0 : index
    %c0_6 = arith.constant 0 : index
    %6 = vector.load %arg3[%c0_4, %c0_5, %c0_6] : memref<2x256x256xbf16, #tpu.memory_space<vmem>>, vector<1x256x256xbf16>
    %7 = vector.shape_cast %6 : vector<1x256x256xbf16> to vector<256x256xbf16>
    %cst_7 = arith.constant dense<0.000000e+00> : vector<2x256xf32>
    %8 = tpu.matmul %5, %7, %cst_7 {dimension_numbers = #tpu.dot_dimension_numbers<[1], [0], [0], [1], [0, 0, 1, 1], [], []>} : vector<2x256xbf16>, vector<256x256xbf16>, vector<2x256xf32> -> vector<2x256xf32>
    %9 = arith.truncf %4 : vector<2x256xf32> to vector<2x256xbf16>
    %c1 = arith.constant 1 : index
    %c0_8 = arith.constant 0 : index
    %c0_9 = arith.constant 0 : index
    %10 = vector.load %arg3[%c1, %c0_8, %c0_9] : memref<2x256x256xbf16, #tpu.memory_space<vmem>>, vector<1x256x256xbf16>
    %11 = vector.shape_cast %10 : vector<1x256x256xbf16> to vector<256x256xbf16>
    %cst_10 = arith.constant dense<0.000000e+00> : vector<2x256xf32>
    %12 = tpu.matmul %9, %11, %cst_10 {dimension_numbers = #tpu.dot_dimension_numbers<[1], [0], [0], [1], [0, 0, 1, 1], [], []>} : vector<2x256xbf16>, vector<256x256xbf16>, vector<2x256xf32> -> vector<2x256xf32>
    %13 = arith.addf %8, %12 : vector<2x256xf32>
    %c0_11 = arith.constant 0 : index
    %14 = memref.load %arg4[%c0_11] : memref<1xf32, #tpu.memory_space<smem>>
    %15 = vector.broadcast %14 : f32 to vector<2x256xf32>
    %16 = arith.addf %13, %15 : vector<2x256xf32>
    %17 = arith.negf %16 : vector<2x256xf32>
    %18 = math.exp %17 : vector<2x256xf32>
    %cst_12 = arith.constant 1.000000e+00 : f32
    %19 = vector.broadcast %cst_12 : f32 to vector<2x256xf32>
    %20 = arith.addf %19, %18 : vector<2x256xf32>
    %21 = arith.divf %19, %20 : vector<2x256xf32>
    %c0_13 = arith.constant 0 : index
    %c0_14 = arith.constant 0 : index
    %22 = vector.load %arg5[%c0_13, %c0_14] : memref<2x256xf32, #tpu.memory_space<vmem>>, vector<2x256xf32>
    tpu.vector_store %arg5[%c0_13, %c0_14], %21 {strides = array<i32>} : memref<2x256xf32, #tpu.memory_space<vmem>>, vector<2x256xf32>,
    return
  }
  func.func @transform_0(%arg0: i32, %arg1: i32) -> (i32, i32, i32) {
    %c0_i32 = arith.constant 0 : i32
    %c0_i32_0 = arith.constant 0 : i32
    %c0_i32_1 = arith.constant 0 : i32
    return %arg0, %c0_i32, %c0_i32_0 : i32, i32, i32
  }
  func.func @transform_1(%arg0: i32, %arg1: i32) -> (i32, i32, i32) {
    %c0_i32 = arith.constant 0 : i32
    %c0_i32_0 = arith.constant 0 : i32
    %c0_i32_1 = arith.constant 0 : i32
    return %c0_i32, %c0_i32_0, %arg1 : i32, i32, i32
  }
  func.func @transform_2(%arg0: i32, %arg1: i32) -> i32 {
    %c0_i32 = arith.constant 0 : i32
    %c0_i32_0 = arith.constant 0 : i32
    return %c0_i32 : i32
  }
  func.func @transform_3(%arg0: i32, %arg1: i32) -> (i32, i32) {
    %c0_i32 = arith.constant 0 : i32
    return %arg0, %arg1 : i32, i32
  }
}

</mosaic_0001>

<llo_original>
// kernel: forward.1
$region0: #{forward.1}
  #allocation0 [shape = 'u32[]', space=smem, size = 0x4, offset = 0x4, fixed_abs, tag = 'smem constant byte address 0x4 - core index']
  #allocation1 [shape = 'u32[144,128]{1,0:T(1,128)}', space=vmem, size = 0x12000, scoped, tag = 'internal scratch']
  #allocation2 [shape = 'f32[1]{0:T(128)S(6)}', space=smem, size = 0x200, scoped, tag = 'scoped memory for forward.1']
  %s0 = inlined_call_operand.vmem [shape: f32[2,4,256], index: 0, kind: input, shape index: {}]
  %s1 = inlined_call_operand.hbm [shape: bf16[2,256,256], index: 1, kind: input, shape index: {}]
  %s2 = inlined_call_operand.<no memory space> [shape: f32[1], index: 2, kind: input, shape index: {}]
  %s3 = inlined_call_operand.vmem [shape: f32[2,256], index: 3, kind: output, shape index: {}]
  %s4 = sld [smem:[#allocation0]]
  $region26: #{forward.1} parent=0
    _
  %s6 = ssub.s32 1, %s4
  %s7 = scalar_select 0, %s6, %s4
  %8 = sst [smem:[#allocation2]] %s2
  $region1: #{forward.1} parent=0
    #allocation3 [shape = 'u8[262144]{0}', space=vmem, size = 0x40000, scoped, tag = 'input window, operand 1, single buffered']
    #allocation4 [shape = 's32[1]{0}', space=sflag, size = 0x4, scoped, tag = 'scoped memory for forward.1']
    %9 = vsyncpa [#allocation4], 0
    // Predicated region
    $region2: #{forward.1} parent=1 // pred_check
      _
    $region3: #{forward.1} parent=1 // pred_check_branch
      %11 = sbr.rel (0) target = $region5
    $region4: #{forward.1} parent=1 // pred_region
      _
    $region5: #{forward.1} parent=1 // pred_fallthru
      _
    // Predicated region
    $region6: #{forward.1} parent=1 // pred_check
      _
    $region7: #{forward.1} parent=1 // pred_check_branch
      %13 = sbr.rel (0) target = $region9
    $region8: #{forward.1} parent=1 // pred_region
      %s15 = ssub.s32 8192, 8192
      %16 = vsyncadd [#allocation4], %s15
      %s17 = sshll.u32 [#allocation3], 4
      %s18 = int_to_ptr.vmem [resolvable:$true] %s17
      %23 = dma.hbm_to_vmem [thread:$0]  %s1, 8192, %s18, [#allocation4], 128, 128, 8
    $region9: #{forward.1} parent=1 // pred_fallthru
      _
    // Predicated region
    $region10: #{forward.1} parent=1 // pred_check
      _
    $region11: #{forward.1} parent=1 // pred_check_branch
      %25 = sbr.rel (0) target = $region13
    $region12: #{forward.1} parent=1 // pred_region
      _
    $region13: #{forward.1} parent=1 // pred_fallthru
      _
    // Predicated region
    $region14: #{forward.1} parent=1 // pred_check
      _
    $region15: #{forward.1} parent=1 // pred_check_branch
      %27 = sbr.rel (0) target = $region17
    $region16: #{forward.1} parent=1 // pred_region
      %28 = dma.done [#allocation4], 8192
    $region17: #{forward.1} parent=1 // pred_fallthru
      _
    %v29 = vld [vmem:[%s0] sm:$0xff]
    %v30 = vld [vmem:[%s0 + $0x8] sm:$0xff]
    %v33 = vcombine.high %v29, %v29
    %v34 = vcombine.high %v30, %v30
    %vm37 = vcmask 1043456
    %v38 = vsel %vm37, %v29, 0.0
    %v39 = vrot.slane %v38, 4
    %v40 = vadd.f32 %v38, %v39
    %v41 = vrot.slane %v40, 2
    %v42 = vadd.f32 %v40, %v41
    %v43 = vrot.slane %v42, 1
    %v44 = vadd.f32 %v42, %v43
    %v45 = vsel %vm37, %v33, 0.0
    %v46 = vrot.slane %v45, 4
    %v47 = vadd.f32 %v45, %v46
    %v48 = vrot.slane %v47, 2
    %v49 = vadd.f32 %v47, %v48
    %v50 = vrot.slane %v49, 1
    %v51 = vadd.f32 %v49, %v50
    %v52 = vsel %vm37, %v30, 0.0
    %v53 = vrot.slane %v52, 4
    %v54 = vadd.f32 %v52, %v53
    %v55 = vrot.slane %v54, 2
    %v56 = vadd.f32 %v54, %v55
    %v57 = vrot.slane %v56, 1
    %v58 = vadd.f32 %v56, %v57
    %v59 = vsel %vm37, %v34, 0.0
    %v60 = vrot.slane %v59, 4
    %v61 = vadd.f32 %v59, %v60
    %v62 = vrot.slane %v61, 2
    %v63 = vadd.f32 %v61, %v62
    %v64 = vrot.slane %v63, 1
    %v65 = vadd.f32 %v63, %v64
    %v66 = vrcp.pop 4.0
    %v67 = vmul.f32 %v44, %v66
    %v68 = vmul.f32 %v51, %v66
    %v69 = vmul.f32 %v58, %v66
    %v70 = vmul.f32 %v65, %v66
    %v71 = vsel %vm37, %v29, -inf
    %v72 = vrot.slane %v71, 4
    %v73 = vmax.f32 %v71, %v72
    %v74 = vrot.slane %v73, 2
    %v75 = vmax.f32 %v73, %v74
    %v76 = vrot.slane %v75, 1
    %v77 = vmax.f32 %v75, %v76
    %v78 = vsel %vm37, %v33, -inf
    %v79 = vrot.slane %v78, 4
    %v80 = vmax.f32 %v78, %v79
    %v81 = vrot.slane %v80, 2
    %v82 = vmax.f32 %v80, %v81
    %v83 = vrot.slane %v82, 1
    %v84 = vmax.f32 %v82, %v83
    %v85 = vsel %vm37, %v30, -inf
    %v86 = vrot.slane %v85, 4
    %v87 = vmax.f32 %v85, %v86
    %v88 = vrot.slane %v87, 2
    %v89 = vmax.f32 %v87, %v88
    %v90 = vrot.slane %v89, 1
    %v91 = vmax.f32 %v89, %v90
    %v92 = vsel %vm37, %v34, -inf
    %v93 = vrot.slane %v92, 4
    %v94 = vmax.f32 %v92, %v93
    %v95 = vrot.slane %v94, 2
    %v96 = vmax.f32 %v94, %v95
    %v97 = vrot.slane %v96, 1
    %v98 = vmax.f32 %v96, %v97
    %v99 = vpack.c.bf16 %v67, %v67
    %v100 = vpack.c.bf16 %v68, %v68
    %v101 = vpack.c.bf16 %v69, %v69
    %v102 = vpack.c.bf16 %v70, %v70
    %v103 = vld [vmem:[#allocation3] sm:$0xff]
    %v104 = vld [vmem:[#allocation3 + $0x8] sm:$0xff]
    %v105 = vld [vmem:[#allocation3 + $0x10] sm:$0xff]
    %v106 = vld [vmem:[#allocation3 + $0x18] sm:$0xff]
    %v107 = vld [vmem:[#allocation3 + $0x20] sm:$0xff]
    %v108 = vld [vmem:[#allocation3 + $0x28] sm:$0xff]
    %v109 = vld [vmem:[#allocation3 + $0x30] sm:$0xff]
    %v110 = vld [vmem:[#allocation3 + $0x38] sm:$0xff]
    %v111 = vld [vmem:[#allocation3 + $0x40] sm:$0xff]
    %v112 = vld [vmem:[#allocation3 + $0x48] sm:$0xff]
    %v113 = vld [vmem:[#allocation3 + $0x50] sm:$0xff]
    %v114 = vld [vmem:[#allocation3 + $0x58] sm:$0xff]
    %v115 = vld [vmem:[#allocation3 + $0x60] sm:$0xff]
    %v116 = vld [vmem:[#allocation3 + $0x68] sm:$0xff]
    %v117 = vld [vmem:[#allocation3 + $0x70] sm:$0xff]
    %v118 = vld [vmem:[#allocation3 + $0x78] sm:$0xff]
    %v119 = vld [vmem:[#allocation3 + $0x80] sm:$0xff]
    %v120 = vld [vmem:[#allocation3 + $0x88] sm:$0xff]
    %v121 = vld [vmem:[#allocation3 + $0x90] sm:$0xff]
    %v122 = vld [vmem:[#allocation3 + $0x98] sm:$0xff]
    %v123 = vld [vmem:[#allocation3 + $0xa0] sm:$0xff]
    %v124 = vld [vmem:[#allocation3 + $0xa8] sm:$0xff]
    %v125 = vld [vmem:[#allocation3 + $0xb0] sm:$0xff]
    %v126 = vld [vmem:[#allocation3 + $0xb8] sm:$0xff]
    %v127 = vld [vmem:[#allocation3 + $0xc0] sm:$0xff]
    %v128 = vld [vmem:[#allocation3 + $0xc8] sm:$0xff]
    %v129 = vld [vmem:[#allocation3 + $0xd0] sm:$0xff]
    %v130 = vld [vmem:[#allocation3 + $0xd8] sm:$0xff]
    %v131 = vld [vmem:[#allocation3 + $0xe0] sm:$0xff]
    %v132 = vld [vmem:[#allocation3 + $0xe8] sm:$0xff]
    %v133 = vld [vmem:[#allocation3 + $0xf0] sm:$0xff]
    %v134 = vld [vmem:[#allocation3 + $0xf8] sm:$0xff]
    %v135 = vpack.c.bf16 %v77, %v77
    %v136 = vpack.c.bf16 %v84, %v84
    %v137 = vpack.c.bf16 %v91, %v91
    %v138 = vpack.c.bf16 %v98, %v98
    %s139 = scalar_lea.vmem [#allocation3], 256
    %v140 = vld [vmem:[%s139] sm:$0xff]
    %v141 = vld [vmem:[%s139 + $0x8] sm:$0xff]
    %v142 = vld [vmem:[%s139 + $0x10] sm:$0xff]
    %v143 = vld [vmem:[%s139 + $0x18] sm:$0xff]
    %v144 = vld [vmem:[%s139 + $0x20] sm:$0xff]
    %v145 = vld [vmem:[%s139 + $0x28] sm:$0xff]
    %v146 = vld [vmem:[%s139 + $0x30] sm:$0xff]
    %v147 = vld [vmem:[%s139 + $0x38] sm:$0xff]
    %v148 = vld [vmem:[%s139 + $0x40] sm:$0xff]
    %v149 = vld [vmem:[%s139 + $0x48] sm:$0xff]
    %v150 = vld [vmem:[%s139 + $0x50] sm:$0xff]
    %v151 = vld [vmem:[%s139 + $0x58] sm:$0xff]
    %v152 = vld [vmem:[%s139 + $0x60] sm:$0xff]
    %v153 = vld [vmem:[%s139 + $0x68] sm:$0xff]
    %v154 = vld [vmem:[%s139 + $0x70] sm:$0xff]
    %v155 = vld [vmem:[%s139 + $0x78] sm:$0xff]
    %v156 = vld [vmem:[%s139 + $0x80] sm:$0xff]
    %v157 = vld [vmem:[%s139 + $0x88] sm:$0xff]
    %v158 = vld [vmem:[%s139 + $0x90] sm:$0xff]
    %v159 = vld [vmem:[%s139 + $0x98] sm:$0xff]
    %v160 = vld [vmem:[%s139 + $0xa0] sm:$0xff]
    %v161 = vld [vmem:[%s139 + $0xa8] sm:$0xff]
    %v162 = vld [vmem:[%s139 + $0xb0] sm:$0xff]
    %v163 = vld [vmem:[%s139 + $0xb8] sm:$0xff]
    %v164 = vld [vmem:[%s139 + $0xc0] sm:$0xff]
    %v165 = vld [vmem:[%s139 + $0xc8] sm:$0xff]
    %v166 = vld [vmem:[%s139 + $0xd0] sm:$0xff]
    %v167 = vld [vmem:[%s139 + $0xd8] sm:$0xff]
    %v168 = vld [vmem:[%s139 + $0xe0] sm:$0xff]
    %v169 = vld [vmem:[%s139 + $0xe8] sm:$0xff]
    %v170 = vld [vmem:[%s139 + $0xf0] sm:$0xff]
    %v171 = vld [vmem:[%s139 + $0xf8] sm:$0xff]
    %v176 = vunpack.c.l.b16 %v135
    %v177 = vunpack.c.l.b16 %v136
    %v178 = vunpack.c.l.b16 %v137
    %v179 = vunpack.c.l.b16 %v138
    %vm180 = vcmask 1041409
    %v181 = vsel %vm180, %v178, %v176
    %v182 = vsel %vm180, %v179, %v177
    %v183 = vpack.c.b16 %v181, %v181
    %v184 = vpack.c.b16 %v182, %v182
    %v219 = vunpack.c.l.b16 %v140
    %v220 = vunpack.c.h.b16 %v140
    %v221 = vunpack.c.l.b16 %v141
    %v222 = vunpack.c.h.b16 %v141
    %v223 = vunpack.c.l.b16 %v142
    %v224 = vunpack.c.h.b16 %v142
    %v225 = vunpack.c.l.b16 %v143
    %v226 = vunpack.c.h.b16 %v143
    %v227 = vunpack.c.l.b16 %v144
    %v228 = vunpack.c.h.b16 %v144
    %v229 = vunpack.c.l.b16 %v145
    %v230 = vunpack.c.h.b16 %v145
    %v231 = vunpack.c.l.b16 %v146
    %v232 = vunpack.c.h.b16 %v146
    %v233 = vunpack.c.l.b16 %v147
    %v234 = vunpack.c.h.b16 %v147
    %v235 = vunpack.c.l.b16 %v148
    %v236 = vunpack.c.h.b16 %v148
    %v237 = vunpack.c.l.b16 %v149
    %v238 = vunpack.c.h.b16 %v149
    %v239 = vunpack.c.l.b16 %v150
    %v240 = vunpack.c.h.b16 %v150
    %v241 = vunpack.c.l.b16 %v151
    %v242 = vunpack.c.h.b16 %v151
    %v243 = vunpack.c.l.b16 %v152
    %v244 = vunpack.c.h.b16 %v152
    %v245 = vunpack.c.l.b16 %v153
    %v246 = vunpack.c.h.b16 %v153
    %v247 = vunpack.c.l.b16 %v154
    %v248 = vunpack.c.h.b16 %v154
    %v249 = vunpack.c.l.b16 %v155
    %v250 = vunpack.c.h.b16 %v155
    %v251 = vunpack.c.l.b16 %v156
    %v252 = vunpack.c.h.b16 %v156
    %v253 = vunpack.c.l.b16 %v157
    %v254 = vunpack.c.h.b16 %v157
    %v255 = vunpack.c.l.b16 %v158
    %v256 = vunpack.c.h.b16 %v158
    %v257 = vunpack.c.l.b16 %v159
    %v258 = vunpack.c.h.b16 %v159
    %v259 = vunpack.c.l.b16 %v160
    %v260 = vunpack.c.h.b16 %v160
    %v261 = vunpack.c.l.b16 %v161
    %v262 = vunpack.c.h.b16 %v161
    %v263 = vunpack.c.l.b16 %v162
    %v264 = vunpack.c.h.b16 %v162
    %v265 = vunpack.c.l.b16 %v163
    %v266 = vunpack.c.h.b16 %v163
    %v267 = vunpack.c.l.b16 %v164
    %v268 = vunpack.c.h.b16 %v164
    %v269 = vunpack.c.l.b16 %v165
    %v270 = vunpack.c.h.b16 %v165
    %v271 = vunpack.c.l.b16 %v166
    %v272 = vunpack.c.h.b16 %v166
    %v273 = vunpack.c.l.b16 %v167
    %v274 = vunpack.c.h.b16 %v167
    %v275 = vunpack.c.l.b16 %v168
    %v276 = vunpack.c.h.b16 %v168
    %v277 = vunpack.c.l.b16 %v169
    %v278 = vunpack.c.h.b16 %v169
    %v279 = vunpack.c.l.b16 %v170
    %v280 = vunpack.c.h.b16 %v170
    %v281 = vunpack.c.l.b16 %v171
    %v282 = vunpack.c.h.b16 %v171
    %v283 = vpack.c.b16 %v221, %v219
    %v284 = vpack.c.b16 %v222, %v220
    %v285 = vpack.c.b16 %v225, %v223
    %v286 = vpack.c.b16 %v226, %v224
    %v287 = vpack.c.b16 %v229, %v227
    %v288 = vpack.c.b16 %v230, %v228
    %v289 = vpack.c.b16 %v233, %v231
    %v290 = vpack.c.b16 %v234, %v232
    %v291 = vpack.c.b16 %v237, %v235
    %v292 = vpack.c.b16 %v238, %v236
    %v293 = vpack.c.b16 %v241, %v239
    %v294 = vpack.c.b16 %v242, %v240
    %v295 = vpack.c.b16 %v245, %v243
    %v296 = vpack.c.b16 %v246, %v244
    %v297 = vpack.c.b16 %v249, %v247
    %v298 = vpack.c.b16 %v250, %v248
    %v299 = vpack.c.b16 %v253, %v251
    %v300 = vpack.c.b16 %v254, %v252
    %v301 = vpack.c.b16 %v257, %v255
    %v302 = vpack.c.b16 %v258, %v256
    %v303 = vpack.c.b16 %v261, %v259
    %v304 = vpack.c.b16 %v262, %v260
    %v305 = vpack.c.b16 %v265, %v263
    %v306 = vpack.c.b16 %v266, %v264
    %v307 = vpack.c.b16 %v269, %v267
    %v308 = vpack.c.b16 %v270, %v268
    %v309 = vpack.c.b16 %v273, %v271
    %v310 = vpack.c.b16 %v274, %v272
    %v311 = vpack.c.b16 %v277, %v275
    %v312 = vpack.c.b16 %v278, %v276
    %v313 = vpack.c.b16 %v281, %v279
    %v314 = vpack.c.b16 %v282, %v280
    %347 = vmatprep.subr.bf16.mxu0 %v298
    %348 = vmatpush1.bf16.msra.mxu0 %v297
    %349 = vmatprep.subr.bf16.mxu0 %v296
    %350 = vmatpush1.bf16.msra.mxu0 %v295
    %351 = vmatprep.subr.bf16.mxu0 %v294
    %352 = vmatpush1.bf16.msra.mxu0 %v293
    %353 = vmatprep.subr.bf16.mxu0 %v292
    %354 = vmatpush1.bf16.msra.mxu0 %v291
    %355 = vmatprep.subr.bf16.mxu0 %v290
    %356 = vmatpush1.bf16.msra.mxu0 %v289
    %357 = vmatprep.subr.bf16.mxu0 %v288
    %358 = vmatpush1.bf16.msra.mxu0 %v287
    %359 = vmatprep.subr.bf16.mxu0 %v286
    %360 = vmatpush1.bf16.msra.mxu0 %v285
    %361 = vmatprep.subr.bf16.mxu0 %v284
    %362 = vmatpush1.bf16.msra.mxu0 %v283
    %363 = vmatprep.subr.bf16.mxu0 %v314
    %364 = vmatpush2.bf16.msra.mxu0 %v313
    %365 = vmatprep.subr.bf16.mxu0 %v312
    %366 = vmatpush2.bf16.msra.mxu0 %v311
    %367 = vmatprep.subr.bf16.mxu0 %v310
    %368 = vmatpush2.bf16.msra.mxu0 %v309
    %369 = vmatprep.subr.bf16.mxu0 %v308
    %370 = vmatpush2.bf16.msra.mxu0 %v307
    %371 = vmatprep.subr.bf16.mxu0 %v306
    %372 = vmatpush2.bf16.msra.mxu0 %v305
    %373 = vmatprep.subr.bf16.mxu0 %v304
    %374 = vmatpush2.bf16.msra.mxu0 %v303
    %375 = vmatprep.subr.bf16.mxu0 %v302
    %376 = vmatpush2.bf16.msra.mxu0 %v301
    %377 = vmatprep.subr.bf16.mxu0 %v300
    %378 = vmatpush2.bf16.msra.mxu0 %v299
    %379 = vmatprep.mubr.bf16.mxu0 %v184
    %380 = vmatmul.mubr.bf16.gmra.mxu0 %v183
    %v381 = vpop.f32.mrf.mxu0
    %v382 = vadd.f32 0.0, %v381
    %v383 = vpop.f32.mrf.mxu0
    %v384 = vadd.f32 0.0, %v383
    %v385 = vpop.f32.mrf.mxu0
    %v386 = vpop.f32.mrf.mxu0
    %387 = vdwg.mxu0
    %v392 = vunpack.c.l.b16 %v99
    %v393 = vunpack.c.l.b16 %v100
    %v394 = vunpack.c.l.b16 %v101
    %v395 = vunpack.c.l.b16 %v102
    %v396 = vsel %vm180, %v394, %v392
    %v397 = vsel %vm180, %v395, %v393
    %v398 = vpack.c.b16 %v396, %v396
    %v399 = vpack.c.b16 %v397, %v397
    %v434 = vunpack.c.l.b16 %v103
    %v435 = vunpack.c.h.b16 %v103
    %v436 = vunpack.c.l.b16 %v104
    %v437 = vunpack.c.h.b16 %v104
    %v438 = vunpack.c.l.b16 %v105
    %v439 = vunpack.c.h.b16 %v105
    %v440 = vunpack.c.l.b16 %v106
    %v441 = vunpack.c.h.b16 %v106
    %v442 = vunpack.c.l.b16 %v107
    %v443 = vunpack.c.h.b16 %v107
    %v444 = vunpack.c.l.b16 %v108
    %v445 = vunpack.c.h.b16 %v108
    %v446 = vunpack.c.l.b16 %v109
    %v447 = vunpack.c.h.b16 %v109
    %v448 = vunpack.c.l.b16 %v110
    %v449 = vunpack.c.h.b16 %v110
    %v450 = vunpack.c.l.b16 %v111
    %v451 = vunpack.c.h.b16 %v111
    %v452 = vunpack.c.l.b16 %v112
    %v453 = vunpack.c.h.b16 %v112
    %v454 = vunpack.c.l.b16 %v113
    %v455 = vunpack.c.h.b16 %v113
    %v456 = vunpack.c.l.b16 %v114
    %v457 = vunpack.c.h.b16 %v114
    %v458 = vunpack.c.l.b16 %v115
    %v459 = vunpack.c.h.b16 %v115
    %v460 = vunpack.c.l.b16 %v116
    %v461 = vunpack.c.h.b16 %v116
    %v462 = vunpack.c.l.b16 %v117
    %v463 = vunpack.c.h.b16 %v117
    %v464 = vunpack.c.l.b16 %v118
    %v465 = vunpack.c.h.b16 %v118
    %v466 = vunpack.c.l.b16 %v119
    %v467 = vunpack.c.h.b16 %v119
    %v468 = vunpack.c.l.b16 %v120
    %v469 = vunpack.c.h.b16 %v120
    %v470 = vunpack.c.l.b16 %v121
    %v471 = vunpack.c.h.b16 %v121
    %v472 = vunpack.c.l.b16 %v122
    %v473 = vunpack.c.h.b16 %v122
    %v474 = vunpack.c.l.b16 %v123
    %v475 = vunpack.c.h.b16 %v123
    %v476 = vunpack.c.l.b16 %v124
    %v477 = vunpack.c.h.b16 %v124
    %v478 = vunpack.c.l.b16 %v125
    %v479 = vunpack.c.h.b16 %v125
    %v480 = vunpack.c.l.b16 %v126
    %v481 = vunpack.c.h.b16 %v126
    %v482 = vunpack.c.l.b16 %v127
    %v483 = vunpack.c.h.b16 %v127
    %v484 = vunpack.c.l.b16 %v128
    %v485 = vunpack.c.h.b16 %v128
    %v486 = vunpack.c.l.b16 %v129
    %v487 = vunpack.c.h.b16 %v129
    %v488 = vunpack.c.l.b16 %v130
    %v489 = vunpack.c.h.b16 %v130
    %v490 = vunpack.c.l.b16 %v131
    %v491 = vunpack.c.h.b16 %v131
    %v492 = vunpack.c.l.b16 %v132
    %v493 = vunpack.c.h.b16 %v132
    %v494 = vunpack.c.l.b16 %v133
    %v495 = vunpack.c.h.b16 %v133
    %v496 = vunpack.c.l.b16 %v134
    %v497 = vunpack.c.h.b16 %v134
    %v498 = vpack.c.b16 %v436, %v434
    %v499 = vpack.c.b16 %v437, %v435
    %v500 = vpack.c.b16 %v440, %v438
    %v501 = vpack.c.b16 %v441, %v439
    %v502 = vpack.c.b16 %v444, %v442
    %v503 = vpack.c.b16 %v445, %v443
    %v504 = vpack.c.b16 %v448, %v446
    %v505 = vpack.c.b16 %v449, %v447
    %v506 = vpack.c.b16 %v452, %v450
    %v507 = vpack.c.b16 %v453, %v451
    %v508 = vpack.c.b16 %v456, %v454
    %v509 = vpack.c.b16 %v457, %v455
    %v510 = vpack.c.b16 %v460, %v458
    %v511 = vpack.c.b16 %v461, %v459
    %v512 = vpack.c.b16 %v464, %v462
    %v513 = vpack.c.b16 %v465, %v463
    %v514 = vpack.c.b16 %v468, %v466
    %v515 = vpack.c.b16 %v469, %v467
    %v516 = vpack.c.b16 %v472, %v470
    %v517 = vpack.c.b16 %v473, %v471
    %v518 = vpack.c.b16 %v476, %v474
    %v519 = vpack.c.b16 %v477, %v475
    %v520 = vpack.c.b16 %v480, %v478
    %v521 = vpack.c.b16 %v481, %v479
    %v522 = vpack.c.b16 %v484, %v482
    %v523 = vpack.c.b16 %v485, %v483
    %v524 = vpack.c.b16 %v488, %v486
    %v525 = vpack.c.b16 %v489, %v487
    %v526 = vpack.c.b16 %v492, %v490
    %v527 = vpack.c.b16 %v493, %v491
    %v528 = vpack.c.b16 %v496, %v494
    %v529 = vpack.c.b16 %v497, %v495
    %562 = vmatprep.subr.bf16.mxu0 %v513
    %563 = vmatpush1.bf16.msra.mxu0 %v512
    %564 = vmatprep.subr.bf16.mxu0 %v511
    %565 = vmatpush1.bf16.msra.mxu0 %v510
    %566 = vmatprep.subr.bf16.mxu0 %v509
    %567 = vmatpush1.bf16.msra.mxu0 %v508
    %568 = vmatprep.subr.bf16.mxu0 %v507
    %569 = vmatpush1.bf16.msra.mxu0 %v506
    %570 = vmatprep.subr.bf16.mxu0 %v505
    %571 = vmatpush1.bf16.msra.mxu0 %v504
    %572 = vmatprep.subr.bf16.mxu0 %v503
    %573 = vmatpush1.bf16.msra.mxu0 %v502
    %574 = vmatprep.subr.bf16.mxu0 %v501
    %575 = vmatpush1.bf16.msra.mxu0 %v500
    %576 = vmatprep.subr.bf16.mxu0 %v499
    %577 = vmatpush1.bf16.msra.mxu0 %v498
    %578 = vmatprep.subr.bf16.mxu0 %v529
    %579 = vmatpush2.bf16.msra.mxu0 %v528
    %580 = vmatprep.subr.bf16.mxu0 %v527
    %581 = vmatpush2.bf16.msra.mxu0 %v526
    %582 = vmatprep.subr.bf16.mxu0 %v525
    %583 = vmatpush2.bf16.msra.mxu0 %v524
    %584 = vmatprep.subr.bf16.mxu0 %v523
    %585 = vmatpush2.bf16.msra.mxu0 %v522
    %586 = vmatprep.subr.bf16.mxu0 %v521
    %587 = vmatpush2.bf16.msra.mxu0 %v520
    %588 = vmatprep.subr.bf16.mxu0 %v519
    %589 = vmatpush2.bf16.msra.mxu0 %v518
    %590 = vmatprep.subr.bf16.mxu0 %v517
    %591 = vmatpush2.bf16.msra.mxu0 %v516
    %592 = vmatprep.subr.bf16.mxu0 %v515
    %593 = vmatpush2.bf16.msra.mxu0 %v514
    %594 = vmatprep.mubr.bf16.mxu0 %v399
    %595 = vmatmul.mubr.bf16.gmra.mxu0 %v398
    %v596 = vpop.f32.mrf.mxu0
    %v597 = vadd.f32 %v382, %v596
    %v598 = vpop.f32.mrf.mxu0
    %v599 = vadd.f32 %v384, %v598
    %v600 = vpop.f32.mrf.mxu0
    %v601 = vpop.f32.mrf.mxu0
    %602 = vdwg.mxu0
    %s603 = sld [smem:[#allocation2]]
    %v604 = vstv %s603
    %v605 = vadd.f32 %v597, %v604
    %v606 = vadd.f32 %v599, %v604
    %v607 = vxor.u32 %v605, 2147483648
    %v608 = vxor.u32 %v606, 2147483648
    %v609 = vmul.f32 %v607, 1.442695
    %v610 = vpow.pop %v609
    %v611 = vmul.f32 %v608, 1.442695
    %v612 = vpow.pop %v611
    %v613 = vadd.f32 %v610, 1.0
    %v614 = vadd.f32 %v612, 1.0
    %v615 = vrcp.pop %v613
    %v616 = vmul.f32 1.0, %v615
    %v617 = vrcp.pop %v614
    %v618 = vmul.f32 1.0, %v617
    %v621 = vcombine.low %v616, %v618
    %v623 = vunpack.c.l.s4 1983009808
    %v624 = vunpack.c.0.s8 %v623
    %v625 = vlaneseq
    %v626 = vshrl.u32 %v625, 7
    %v627 = vsub.s32 %v624, %v626
    %v628 = vrot.slane %v621, %v627
    %630 = vst [vmem:[%s3] sm:$0xf] %v628
    // Predicated region
    $region18: #{forward.1} parent=1 // pred_check
      _
    $region19: #{forward.1} parent=1 // pred_check_branch
      %632 = sbr.rel (0) target = $region21
    $region20: #{forward.1} parent=1 // pred_region
      _
    $region21: #{forward.1} parent=1 // pred_fallthru
      _
    // Predicated region
    $region22: #{forward.1} parent=1 // pred_check
      _
    $region23: #{forward.1} parent=1 // pred_check_branch
      %634 = sbr.rel (0) target = $region25
    $region24: #{forward.1} parent=1 // pred_region
      _
    $region25: #{forward.1} parent=1 // pred_fallthru
      _
    %635 = vsyncpa [#allocation4], 1

</llo_original>
